<compile_context>
chip_gen: v7x
topology: tpu7x:2x2x1
jax: 0.10.0
libtpu: 0.0.40
codegen_flags: <defaults>
</compile_context>

<pallas_src>
import functools

import jax
import jax.numpy as jnp
import numpy as np
from jax.experimental import pallas as pl
from jax.experimental.pallas import tpu as pltpu


def _round_up(n: int, m: int) -> int:
    return (n + m - 1) // m * m


def _vq_kernel(x_ref, emb_ref, e2_ref, out_ref):
    # x_ref:   (TM, C)      row tile of flattened latents
    # emb_ref: (K_pad, C)   full (padded) codebook, resident every grid step
    # e2_ref:  (1, K_pad)   precomputed ||E||^2 (padded columns = huge sentinel)
    # out_ref: (TM, C)      quantized tile
    x = x_ref[...]                                   # native dtype (bf16 stays bf16 for MXU)
    e = emb_ref[...]
    e2 = e2_ref[...].astype(jnp.float32)             # (1, K_pad)

    xf = x.astype(jnp.float32)
    x2 = jnp.sum(xf * xf, axis=-1, keepdims=True)    # (TM, 1) f32, VPU

    # Squared L2 via expansion: ||x||^2 - 2 x.E^T + ||E||^2.
    # Contract the last dim of both operands -> no in-kernel transpose of the codebook.
    xe = jax.lax.dot_general(
        x, e, (((1,), (1,)), ((), ())),
        preferred_element_type=jnp.float32)          # (TM, K_pad) on MXU, f32 accumulate
    dist2 = x2 - 2.0 * xe + e2                       # (TM, K_pad) f32

    tm, kp = dist2.shape
    # argmin over K with first-minimum tie-break (matches torch.argmin).
    iota = jax.lax.broadcasted_iota(jnp.int32, (tm, kp), 1)
    row_min = jnp.min(dist2, axis=-1, keepdims=True)
    inds = jnp.min(jnp.where(dist2 == row_min, iota, kp), axis=-1,
                   keepdims=True)                    # (TM, 1) int32

    # Gather codebook rows via one-hot matmul (MXU-friendly gather); one-hot in the
    # codebook dtype so bf16 codebooks keep the MXU in bf16.
    onehot = (iota == inds).astype(e.dtype)          # (TM, K_pad)
    q = jnp.dot(onehot, e, preferred_element_type=jnp.float32)   # (TM, C)
    out_ref[...] = q.astype(out_ref.dtype)


@functools.partial(jax.jit, static_argnames=("tm",))
def vector_quantizer_forward(latents, embedding, *, tm=256):
    """latents: (B, T, C); embedding: (K, C). Returns (B, T, C) quantized latents."""
    B, T, C = latents.shape
    K, Ce = embedding.shape
    assert Ce == C
    N = B * T

    # ---- padding / tiling decisions (all static under jit) -----------------------------
    K_pad = _round_up(max(K, 128), 128)              # fill MXU result lanes
    tm_eff = _round_up(min(tm, _round_up(N, 8)), 8)  # big tile, but no bigger than the problem
    N_pad = _round_up(N, tm_eff)                     # pad rows instead of asserting N % tm == 0

    x = latents.reshape(N, C)
    if N_pad != N:
        x = jnp.pad(x, ((0, N_pad - N), (0, 0)))

    # Loop-invariant codebook prep, hoisted out of the kernel (done once per call).
    emb_f32 = embedding.astype(jnp.float32)
    e2 = jnp.sum(emb_f32 * emb_f32, axis=-1)[None, :]            # (1, K)
    if K_pad != K:
        emb_p = jnp.pad(embedding, ((0, K_pad - K), (0, 0)))     # zero sentinel rows
        e2 = jnp.pad(e2, ((0, 0), (0, K_pad - K)),
                     constant_values=1e30)                       # never selected by argmin
    else:
        emb_p = embedding

    grid = (N_pad // tm_eff,)

    # ---- VMEM budget (double-buffered tiles + resident codebook + temporaries) ---------
    bytes_needed = (
        2 * 2 * tm_eff * C * 4          # input + output tiles, double buffered (f32 bound)
        + 2 * K_pad * C * 4             # codebook buffers
        + 2 * K_pad * 4                 # ||E||^2
        + 3 * tm_eff * K_pad * 4        # dist2 / iota / one-hot temporaries
    )
    vmem_limit = int(min(max(2 * bytes_needed, 16 << 20), 64 << 20))

    cost = pl.CostEstimate(
        flops=4 * N_pad * K_pad * C,                              # two matmuls
        transcendentals=0,
        bytes_accessed=2 * N_pad * C * 4 + K_pad * C * 4 + K_pad * 4,
    )

    out = pl.pallas_call(
        _vq_kernel,
        out_shape=jax.ShapeDtypeStruct((N_pad, C), latents.dtype),
        grid_spec=pltpu.PrefetchScalarGridSpec(
            num_scalar_prefetch=0,
            grid=grid,
            in_specs=[
                pl.BlockSpec((tm_eff, C), lambda i: (i, 0)),     # row tile of latents
                pl.BlockSpec((K_pad, C), lambda i: (0, 0)),      # full codebook, resident
                pl.BlockSpec((1, K_pad), lambda i: (0, 0)),      # precomputed ||E||^2
            ],
            out_specs=pl.BlockSpec((tm_eff, C), lambda i: (i, 0)),
        ),
        compiler_params=pltpu.CompilerParams(
            dimension_semantics=("parallel",),
            vmem_limit_bytes=vmem_limit,
        ),
        cost_estimate=cost,
    )(x, emb_p, e2)

    return out[:N].reshape(B, T, C)


def _reference_forward(latents, embedding):
    # Pure-JAX reference mirroring the PyTorch module.
    dist = jnp.linalg.norm(latents[..., None, :] - embedding, axis=-1)   # (B,T,K)
    inds = jnp.argmin(dist, axis=-1)                                     # (B,T)
    return embedding[inds]                                               # (B,T,C)


if __name__ == "__main__":
    B, T, C = 2, 8, 32
    K = 16  # num_embeddings

    key = jax.random.PRNGKey(0)
    k_lat, k_emb = jax.random.split(key)

    latents = jax.random.normal(k_lat, (B, T, C), dtype=jnp.float32)
    # nn.init.uniform_(embedding.weight, -1/K, 1/K), deterministic in-script.
    embedding = jax.random.uniform(
        k_emb, (K, C), dtype=jnp.float32, minval=-1.0 / K, maxval=1.0 / K
    )

    out = vector_quantizer_forward(latents, embedding)
    out = jax.block_until_ready(out)

    ref = _reference_forward(latents, embedding)
    np.testing.assert_allclose(np.asarray(out), np.asarray(ref), rtol=1e-5, atol=1e-5)

    print("KERNEL_OK")
</pallas_src>

<mosaic_0001>
module attributes {stable_mosaic.version = 11 : i64} {
  func.func @_vq_kernel(%arg0: i32, %arg1: memref<16x32xf32, #tpu.memory_space<vmem>>, %arg2: memref<128x32xf32, #tpu.memory_space<vmem>>, %arg3: memref<1x128xf32, #tpu.memory_space<vmem>>, %arg4: memref<16x32xf32, #tpu.memory_space<vmem>>) attributes {dimension_semantics = [#tpu.dimension_semantics<parallel>], iteration_bounds = array<i64: 1>, scalar_prefetch = 0 : i64, scratch_operands = 0 : i64, tpu.core_type = #tpu.core_type<tc>, window_params = [{transform_indices = @transform_0, window_bounds = array<i64: 16, 32>}, {pipeline_mode = #tpu.pipeline_mode<synchronous>, transform_indices = @transform_1, window_bounds = array<i64: 128, 32>}, {pipeline_mode = #tpu.pipeline_mode<synchronous>, transform_indices = @transform_2, window_bounds = array<i64: 1, 128>}, {transform_indices = @transform_3, window_bounds = array<i64: 16, 32>}]} {
    %c0 = arith.constant 0 : index
    %c0_0 = arith.constant 0 : index
    %0 = vector.load %arg1[%c0, %c0_0] : memref<16x32xf32, #tpu.memory_space<vmem>>, vector<16x32xf32>
    %c0_1 = arith.constant 0 : index
    %c0_2 = arith.constant 0 : index
    %1 = vector.load %arg2[%c0_1, %c0_2] : memref<128x32xf32, #tpu.memory_space<vmem>>, vector<128x32xf32>
    %c0_3 = arith.constant 0 : index
    %c0_4 = arith.constant 0 : index
    %2 = vector.load %arg3[%c0_3, %c0_4] : memref<1x128xf32, #tpu.memory_space<vmem>>, vector<1x128xf32>
    %3 = arith.mulf %0, %0 : vector<16x32xf32>
    %cst = arith.constant dense<0.000000e+00> : vector<16xf32>
    %4 = vector.multi_reduction <add>, %3, %cst [1] : vector<16x32xf32> to vector<16xf32>
    %5 = vector.shape_cast %4 : vector<16xf32> to vector<16x1xf32>
    %cst_5 = arith.constant dense<0.000000e+00> : vector<16x128xf32>
    %6 = tpu.matmul %0, %1, %cst_5 {dimension_numbers = #tpu.dot_dimension_numbers<[1], [1], [0], [0], [0, 0, 1, 0], [], []>} : vector<16x32xf32>, vector<128x32xf32>, vector<16x128xf32> -> vector<16x128xf32>
    %cst_6 = arith.constant 2.000000e+00 : f32
    %7 = vector.broadcast %cst_6 : f32 to vector<16x128xf32>
    %8 = arith.mulf %7, %6 : vector<16x128xf32>
    %9 = vector.broadcast %5 : vector<16x1xf32> to vector<16x128xf32>
    %10 = arith.subf %9, %8 : vector<16x128xf32>
    %11 = vector.broadcast %2 : vector<1x128xf32> to vector<16x128xf32>
    %12 = arith.addf %10, %11 : vector<16x128xf32>
    %13 = tpu.iota {dimensions = array<i32: 1>} : vector<16x128xi32>
    %cst_7 = arith.constant dense<0x7F800000> : vector<16xf32>
    %14 = vector.multi_reduction <minimumf>, %12, %cst_7 [1] : vector<16x128xf32> to vector<16xf32>
    %15 = vector.shape_cast %14 : vector<16xf32> to vector<16x1xf32>
    %16 = vector.broadcast %15 : vector<16x1xf32> to vector<16x128xf32>
    %17 = arith.cmpf oeq, %12, %16 : vector<16x128xf32>
    %c128_i32 = arith.constant 128 : i32
    %18 = vector.broadcast %c128_i32 : i32 to vector<16x128xi32>
    %19 = arith.select %17, %13, %18 : vector<16x128xi1>, vector<16x128xi32>
    %cst_8 = arith.constant dense<2147483647> : vector<16xi32>
    %20 = vector.multi_reduction <minsi>, %19, %cst_8 [1] : vector<16x128xi32> to vector<16xi32>
    %21 = vector.shape_cast %20 : vector<16xi32> to vector<16x1xi32>
    %22 = vector.broadcast %21 : vector<16x1xi32> to vector<16x128xi32>
    %23 = arith.cmpi eq, %13, %22 : vector<16x128xi32>
    %24 = arith.extui %23 : vector<16x128xi1> to vector<16x128xi32>
    %25 = arith.sitofp %24 : vector<16x128xi32> to vector<16x128xf32>
    %cst_9 = arith.constant dense<0.000000e+00> : vector<16x32xf32>
    %26 = tpu.matmul %25, %1, %cst_9 {dimension_numbers = #tpu.dot_dimension_numbers<[1], [0], [0], [1], [0, 0, 1, 1], [], []>} : vector<16x128xf32>, vector<128x32xf32>, vector<16x32xf32> -> vector<16x32xf32>
    %c0_10 = arith.constant 0 : index
    %c0_11 = arith.constant 0 : index
    %27 = vector.load %arg4[%c0_10, %c0_11] : memref<16x32xf32, #tpu.memory_space<vmem>>, vector<16x32xf32>
    tpu.vector_store %arg4[%c0_10, %c0_11], %26 {strides = array<i32>} : memref<16x32xf32, #tpu.memory_space<vmem>>, vector<16x32xf32>,
    return
  }
  func.func @transform_0(%arg0: i32) -> (i32, i32) {
    %c0_i32 = arith.constant 0 : i32
    %c0_i32_0 = arith.constant 0 : i32
    return %arg0, %c0_i32 : i32, i32
  }
  func.func @transform_1(%arg0: i32) -> (i32, i32) {
    %c0_i32 = arith.constant 0 : i32
    %c0_i32_0 = arith.constant 0 : i32
    %c0_i32_1 = arith.constant 0 : i32
    return %c0_i32, %c0_i32_0 : i32, i32
  }
  func.func @transform_2(%arg0: i32) -> (i32, i32) {
    %c0_i32 = arith.constant 0 : i32
    %c0_i32_0 = arith.constant 0 : i32
    %c0_i32_1 = arith.constant 0 : i32
    return %c0_i32, %c0_i32_0 : i32, i32
  }
  func.func @transform_3(%arg0: i32) -> (i32, i32) {
    %c0_i32 = arith.constant 0 : i32
    %c0_i32_0 = arith.constant 0 : i32
    return %arg0, %c0_i32 : i32, i32
  }
}

</mosaic_0001>

<llo_original>
// kernel: vector_quantizer_forward.1
$region0: #{vector_quantizer_forward.1}
  #allocation0 [shape = 'u32[]', space=smem, size = 0x4, offset = 0x4, fixed_abs, tag = 'smem constant byte address 0x4 - core index']
  #allocation1 [shape = 'u32[144,128]{1,0:T(1,128)}', space=vmem, size = 0x12000, scoped, tag = 'internal scratch']
  %s0 = inlined_call_operand.vmem [shape: f32[16,32], index: 0, kind: input, shape index: {}]
  %s1 = inlined_call_operand.vmem [shape: f32[128,32], index: 1, kind: input, shape index: {}]
  %s2 = inlined_call_operand.vmem [shape: f32[1,128], index: 2, kind: input, shape index: {}]
  %s3 = inlined_call_operand.hbm [shape: f32[16,32], index: 3, kind: output, shape index: {}]
  %s4 = sld [smem:[#allocation0]]
  $region22: #{vector_quantizer_forward.1} parent=0
    _
  %s6 = ssub.s32 1, %s4
  %s7 = scalar_select 0, %s6, %s4
  $region1: #{vector_quantizer_forward.1} parent=0
    #allocation2 [shape = 'u8[8192]{0}', space=vmem, size = 0x2000, scoped, tag = 'output window, operand 0, single buffered']
    #allocation3 [shape = 's32[1]{0}', space=sflag, size = 0x4, scoped, tag = 'scoped memory for vector_quantizer_forward.1']
    %8 = vsyncpa [#allocation3], 0
    // Predicated region
    $region2: #{vector_quantizer_forward.1} parent=1 // pred_check
      _
    $region3: #{vector_quantizer_forward.1} parent=1 // pred_check_branch
      %10 = sbr.rel (0) target = $region5
    $region4: #{vector_quantizer_forward.1} parent=1 // pred_region
      _
    $region5: #{vector_quantizer_forward.1} parent=1 // pred_fallthru
      _
    // Predicated region
    $region6: #{vector_quantizer_forward.1} parent=1 // pred_check
      _
    $region7: #{vector_quantizer_forward.1} parent=1 // pred_check_branch
      %12 = sbr.rel (0) target = $region9
    $region8: #{vector_quantizer_forward.1} parent=1 // pred_region
      _
    $region9: #{vector_quantizer_forward.1} parent=1 // pred_fallthru
      _
    // Predicated region
    $region10: #{vector_quantizer_forward.1} parent=1 // pred_check
      _
    $region11: #{vector_quantizer_forward.1} parent=1 // pred_check_branch
      %14 = sbr.rel (0) target = $region13
    $region12: #{vector_quantizer_forward.1} parent=1 // pred_region
      _
    $region13: #{vector_quantizer_forward.1} parent=1 // pred_fallthru
      _
    %v15 = vld [vmem:[%s0] sm:$0xff]
    %v16 = vld [vmem:[%s0 + $0x8] sm:$0xff]
    %v17 = vld [vmem:[%s1] sm:$0xff]
    %v18 = vld [vmem:[%s1 + $0x8] sm:$0xff]
    %v19 = vld [vmem:[%s1 + $0x10] sm:$0xff]
    %v20 = vld [vmem:[%s1 + $0x18] sm:$0xff]
    %v21 = vld [vmem:[%s1 + $0x20] sm:$0xff]
    %v22 = vld [vmem:[%s1 + $0x28] sm:$0xff]
    %v23 = vld [vmem:[%s1 + $0x30] sm:$0xff]
    %v24 = vld [vmem:[%s1 + $0x38] sm:$0xff]
    %v25 = vld [vmem:[%s1 + $0x40] sm:$0xff]
    %v26 = vld [vmem:[%s1 + $0x48] sm:$0xff]
    %v27 = vld [vmem:[%s1 + $0x50] sm:$0xff]
    %v28 = vld [vmem:[%s1 + $0x58] sm:$0xff]
    %v29 = vld [vmem:[%s1 + $0x60] sm:$0xff]
    %v30 = vld [vmem:[%s1 + $0x68] sm:$0xff]
    %v31 = vld [vmem:[%s1 + $0x70] sm:$0xff]
    %v32 = vld [vmem:[%s1 + $0x78] sm:$0xff]
    %v33 = vld [vmem:[%s2] sm:$0x1]
    %v34 = vmul.f32 %v15, %v15
    %v35 = vmul.f32 %v16, %v16
    %vm36 = vcmask 261120
    %v37 = vsel %vm36, %v34, 0.0
    %38 = vadd.xlane.f32.xlu0 %v37
    %v39 = vpop.xlane.xlu0 %38
    %v40 = vsel %vm36, %v35, 0.0
    %41 = vadd.xlane.f32.xlu0 %v40
    %v42 = vpop.xlane.xlu0 %41
    %v44 = vsel %vm36, %v15, 0
    %v47 = vsel %vm36, %v16, 0
    %v50 = vsel %vm36, %v17, 0
    %v53 = vsel %vm36, %v18, 0
    %v56 = vsel %vm36, %v19, 0
    %v59 = vsel %vm36, %v20, 0
    %v62 = vsel %vm36, %v21, 0
    %v65 = vsel %vm36, %v22, 0
    %v68 = vsel %vm36, %v23, 0
    %v71 = vsel %vm36, %v24, 0
    %v74 = vsel %vm36, %v25, 0
    %v77 = vsel %vm36, %v26, 0
    %v80 = vsel %vm36, %v27, 0
    %v83 = vsel %vm36, %v28, 0
    %v86 = vsel %vm36, %v29, 0
    %v89 = vsel %vm36, %v30, 0
    %v92 = vsel %vm36, %v31, 0
    %v95 = vsel %vm36, %v32, 0
    %97 = vmatprep.subr.mxu0 0.0
    %98 = vmatpush1.xpose.msra.mxu0 %v50
    %99 = vmatprep.subr.mxu0 0.0
    %100 = vmatpush1.xpose.msra.mxu0 %v53
    %101 = vmatprep.subr.mxu0 0.0
    %102 = vmatpush1.xpose.msra.mxu0 %v56
    %103 = vmatprep.subr.mxu0 0.0
    %104 = vmatpush1.xpose.msra.mxu0 %v59
    %105 = vmatprep.subr.mxu0 0.0
    %106 = vmatpush1.xpose.msra.mxu0 %v62
    %107 = vmatprep.subr.mxu0 0.0
    %108 = vmatpush1.xpose.msra.mxu0 %v65
    %109 = vmatprep.subr.mxu0 0.0
    %110 = vmatpush1.xpose.msra.mxu0 %v68
    %111 = vmatprep.subr.mxu0 0.0
    %112 = vmatpush1.xpose.msra.mxu0 %v71
    %113 = vmatprep.subr.mxu0 0.0
    %114 = vmatpush1.xpose.msra.mxu0 %v74
    %115 = vmatprep.subr.mxu0 0.0
    %116 = vmatpush1.xpose.msra.mxu0 %v77
    %117 = vmatprep.subr.mxu0 0.0
    %118 = vmatpush1.xpose.msra.mxu0 %v80
    %119 = vmatprep.subr.mxu0 0.0
    %120 = vmatpush1.xpose.msra.mxu0 %v83
    %121 = vmatprep.subr.mxu0 0.0
    %122 = vmatpush1.xpose.msra.mxu0 %v86
    %123 = vmatprep.subr.mxu0 0.0
    %124 = vmatpush1.xpose.msra.mxu0 %v89
    %125 = vmatprep.subr.mxu0 0.0
    %126 = vmatpush1.xpose.msra.mxu0 %v92
    %127 = vmatprep.subr.mxu0 0.0
    %128 = vmatpush1.xpose.msra.mxu0 %v95
    %129 = vmatprep.subr.mxu0 0.0
    %130 = vmatpush1.xpose.msra.mxu0 0.0
    %131 = vmatprep.subr.mxu0 0.0
    %132 = vmatpush1.xpose.msra.mxu0 0.0
    %133 = vmatprep.subr.mxu0 0.0
    %134 = vmatpush1.xpose.msra.mxu0 0.0
    %135 = vmatprep.subr.mxu0 0.0
    %136 = vmatpush1.xpose.msra.mxu0 0.0
    %137 = vmatprep.subr.mxu0 0.0
    %138 = vmatpush1.xpose.msra.mxu0 0.0
    %139 = vmatprep.subr.mxu0 0.0
    %140 = vmatpush1.xpose.msra.mxu0 0.0
    %141 = vmatprep.subr.mxu0 0.0
    %142 = vmatpush1.xpose.msra.mxu0 0.0
    %143 = vmatprep.subr.mxu0 0.0
    %144 = vmatpush1.xpose.msra.mxu0 0.0
    %145 = vmatprep.subr.mxu0 0.0
    %146 = vmatpush1.xpose.msra.mxu0 0.0
    %147 = vmatprep.subr.mxu0 0.0
    %148 = vmatpush1.xpose.msra.mxu0 0.0
    %149 = vmatprep.subr.mxu0 0.0
    %150 = vmatpush1.xpose.msra.mxu0 0.0
    %151 = vmatprep.subr.mxu0 0.0
    %152 = vmatpush1.xpose.msra.mxu0 0.0
    %153 = vmatprep.subr.mxu0 0.0
    %154 = vmatpush1.xpose.msra.mxu0 0.0
    %155 = vmatprep.subr.mxu0 0.0
    %156 = vmatpush1.xpose.msra.mxu0 0.0
    %157 = vmatprep.subr.mxu0 0.0
    %158 = vmatpush1.xpose.msra.mxu0 0.0
    %159 = vmatprep.subr.mxu0 0.0
    %160 = vmatpush1.xpose.msra.mxu0 0.0
    %161 = vmatprep.mubr.f32.mxu0 0.0
    %162 = vmatmul.mubr.f32.gmra.mrb[0].mxu0 %v44
    %v163 = vpop.f32.mrb[0].mxu0
    %v164 = vadd.f32 0.0, %v163
    %v165 = vpop.f32.mrb[0].mxu0
    %166 = vmatprep.mubr.f32.mxu0 0.0
    %167 = vmatmul.mubr.f32.gmra.mrb[0].mxu0 %v47
    %v168 = vpop.f32.mrb[0].mxu0
    %v169 = vadd.f32 0.0, %v168
    %v170 = vpop.f32.mrb[0].mxu0
    %171 = vdwg.mxu0
    %v172 = vmul.f32 %v164, 2.0
    %v173 = vmul.f32 %v169, 2.0
    %v174 = vsub.f32 %v39, %v172
    %v175 = vsub.f32 %v42, %v173
    %v177 = vlaneseq
    %v178 = vshrl.u32 %v177, 7
    %v179 = vsub.s32 0, %v178
    %v180 = vrot.slane %v33, %v179
    %v182 = vadd.f32 %v174, %v180
    %v183 = vadd.f32 %v175, %v180
    %v184 = vlaneseq
    %v185 = vand.u32 %v184, 127
    %186 = vmin.xlane.f32.xlu0 %v182
    %v187 = vpop.xlane.xlu0 %186
    %188 = vmin.xlane.f32.xlu0 %v183
    %v189 = vpop.xlane.xlu0 %188
    %vm190 = vcmp.eq.f32.partialorder %v182, %v187
    %vm191 = vcmp.eq.f32.partialorder %v183, %v189
    %v192 = vsel %vm190, %v185, 128
    %v193 = vsel %vm191, %v185, 128
    %v194 = vand.u32 %v192, 65535
    %v195 = vshra.s32 %v192, 16
    %v196 = vcvt.s32.f32 %v194
    %v197 = vcvt.s32.f32 %v195
    %198 = vmin.xlane.f32.xlu0 %v197
    %v199 = vpop.xlane.xlu0 %198
    %vm200 = vcmp.eq.f32.partialorder %v197, %v199
    %v201 = vsel %vm200, %v196, inf
    %202 = vmin.xlane.f32.xlu0 %v201
    %v203 = vpop.xlane.xlu0 %202
    %v204 = vcvt.f32.s32 %v203
    %v205 = vcvt.f32.s32 %v199
    %v206 = vshll.u32 %v205, 16
    %v207 = vadd.s32 %v206, %v204
    %v208 = vand.u32 %v193, 65535
    %v209 = vshra.s32 %v193, 16
    %v210 = vcvt.s32.f32 %v208
    %v211 = vcvt.s32.f32 %v209
    %212 = vmin.xlane.f32.xlu0 %v211
    %v213 = vpop.xlane.xlu0 %212
    %vm214 = vcmp.eq.f32.partialorder %v211, %v213
    %v215 = vsel %vm214, %v210, inf
    %216 = vmin.xlane.f32.xlu0 %v215
    %v217 = vpop.xlane.xlu0 %216
    %v218 = vcvt.f32.s32 %v217
    %v219 = vcvt.f32.s32 %v213
    %v220 = vshll.u32 %v219, 16
    %v221 = vadd.s32 %v220, %v218
    %vm222 = vcmp.eq.s32.totalorder %v185, %v207
    %vm223 = vcmp.eq.s32.totalorder %v185, %v221
    %v224 = vsel %vm222, 1, 0
    %v225 = vsel %vm223, 1, 0
    %v226 = vcvt.s32.f32 %v224
    %v227 = vcvt.s32.f32 %v225
    %228 = vmatprep.subr.mxu0 0.0
    %229 = vmatpush1.msra.mxu0 %v17
    %230 = vmatprep.subr.mxu0 0.0
    %231 = vmatpush1.msra.mxu0 %v18
    %232 = vmatprep.subr.mxu0 0.0
    %233 = vmatpush1.msra.mxu0 %v19
    %234 = vmatprep.subr.mxu0 0.0
    %235 = vmatpush1.msra.mxu0 %v20
    %236 = vmatprep.subr.mxu0 0.0
    %237 = vmatpush1.msra.mxu0 %v21
    %238 = vmatprep.subr.mxu0 0.0
    %239 = vmatpush1.msra.mxu0 %v22
    %240 = vmatprep.subr.mxu0 0.0
    %241 = vmatpush1.msra.mxu0 %v23
    %242 = vmatprep.subr.mxu0 0.0
    %243 = vmatpush1.msra.mxu0 %v24
    %244 = vmatprep.subr.mxu0 0.0
    %245 = vmatpush1.msra.mxu0 %v25
    %246 = vmatprep.subr.mxu0 0.0
    %247 = vmatpush1.msra.mxu0 %v26
    %248 = vmatprep.subr.mxu0 0.0
    %249 = vmatpush1.msra.mxu0 %v27
    %250 = vmatprep.subr.mxu0 0.0
    %251 = vmatpush1.msra.mxu0 %v28
    %252 = vmatprep.subr.mxu0 0.0
    %253 = vmatpush1.msra.mxu0 %v29
    %254 = vmatprep.subr.mxu0 0.0
    %255 = vmatpush1.msra.mxu0 %v30
    %256 = vmatprep.subr.mxu0 0.0
    %257 = vmatpush1.msra.mxu0 %v31
    %258 = vmatprep.subr.mxu0 0.0
    %259 = vmatpush1.msra.mxu0 %v32
    %260 = vmatprep.subr.mxu0 0.0
    %261 = vmatpush1.msra.mxu0 0.0
    %262 = vmatprep.subr.mxu0 0.0
    %263 = vmatpush1.msra.mxu0 0.0
    %264 = vmatprep.subr.mxu0 0.0
    %265 = vmatpush1.msra.mxu0 0.0
    %266 = vmatprep.subr.mxu0 0.0
    %267 = vmatpush1.msra.mxu0 0.0
    %268 = vmatprep.subr.mxu0 0.0
    %269 = vmatpush1.msra.mxu0 0.0
    %270 = vmatprep.subr.mxu0 0.0
    %271 = vmatpush1.msra.mxu0 0.0
    %272 = vmatprep.subr.mxu0 0.0
    %273 = vmatpush1.msra.mxu0 0.0
    %274 = vmatprep.subr.mxu0 0.0
    %275 = vmatpush1.msra.mxu0 0.0
    %276 = vmatprep.subr.mxu0 0.0
    %277 = vmatpush1.msra.mxu0 0.0
    %278 = vmatprep.subr.mxu0 0.0
    %279 = vmatpush1.msra.mxu0 0.0
    %280 = vmatprep.subr.mxu0 0.0
    %281 = vmatpush1.msra.mxu0 0.0
    %282 = vmatprep.subr.mxu0 0.0
    %283 = vmatpush1.msra.mxu0 0.0
    %284 = vmatprep.subr.mxu0 0.0
    %285 = vmatpush1.msra.mxu0 0.0
    %286 = vmatprep.subr.mxu0 0.0
    %287 = vmatpush1.msra.mxu0 0.0
    %288 = vmatprep.subr.mxu0 0.0
    %289 = vmatpush1.msra.mxu0 0.0
    %290 = vmatprep.subr.mxu0 0.0
    %291 = vmatpush1.msra.mxu0 0.0
    %292 = vmatprep.mubr.f32.mxu0 0.0
    %293 = vmatmul.mubr.f32.gmra.mrb[0].mxu0 %v226
    %v294 = vpop.f32.mrb[0].mxu0
    %v295 = vadd.f32 0.0, %v294
    %v296 = vpop.f32.mrb[0].mxu0
    %297 = vmatprep.mubr.f32.mxu0 0.0
    %298 = vmatmul.mubr.f32.gmra.mrb[0].mxu0 %v227
    %v299 = vpop.f32.mrb[0].mxu0
    %v300 = vadd.f32 0.0, %v299
    %v301 = vpop.f32.mrb[0].mxu0
    %302 = vdwg.mxu0
    %303 = vst.msk [vmem:[#allocation2] sm:$0xff] %vm36, %v295
    %304 = vst.msk [vmem:[#allocation2 + $0x8] sm:$0xff] %vm36, %v300
    // Predicated region
    $region14: #{vector_quantizer_forward.1} parent=1 // pred_check
      _
    $region15: #{vector_quantizer_forward.1} parent=1 // pred_check_branch
      %306 = sbr.rel (0) target = $region17
    $region16: #{vector_quantizer_forward.1} parent=1 // pred_region
      %s308 = ssub.s32 256, 256
      %309 = vsyncadd [#allocation3], %s308
      %s310 = sshll.u32 [#allocation2], 4
      %s311 = int_to_ptr.vmem [resolvable:$true] %s310
      %316 = dma.vmem_to_hbm [thread:$0]  %s311, 256, %s3, [#allocation3], 128, 128, 8
    $region17: #{vector_quantizer_forward.1} parent=1 // pred_fallthru
      _
    // Predicated region
    $region18: #{vector_quantizer_forward.1} parent=1 // pred_check
      _
    $region19: #{vector_quantizer_forward.1} parent=1 // pred_check_branch
      %318 = sbr.rel (0) target = $region21
    $region20: #{vector_quantizer_forward.1} parent=1 // pred_region
      %319 = dma.done [#allocation3], 256
    $region21: #{vector_quantizer_forward.1} parent=1 // pred_fallthru
      _
    %320 = vsyncpa [#allocation3], 1

</llo_original>
